<compile_context>
chip_gen: v6e
topology: v6e:2x2x1
jax: 0.10.0
libtpu: 0.0.40
codegen_flags: <defaults>
</compile_context>

<pallas_src>
import functools

import jax
import jax.numpy as jnp
from jax import lax
from jax.experimental import pallas as pl
from jax.experimental.pallas import tpu as pltpu


def _round_up(x, m):
    return ((x + m - 1) // m) * m


def _choose_block_rows(a, n, d, max_rows=256, budget_bytes=24 * 1024 * 1024):
    """Anchor-row tile (multiple of 8) keeping f32 [tA, N] temporaries +
    features inside a conservative VMEM budget (valid on v5e/v6e/v7x)."""
    t = _round_up(min(max_rows, _round_up(a, 8)), 8)
    while t > 8 and 4 * (n * d + 2 * t * d + 6 * t * n) > budget_bytes:
        t = max(8, _round_up(t // 2, 8))
    return t


def _supcon_kernel(*refs, temperature, base_temperature, a_true, use_labels):
    if use_labels:
        lrow_ref, lcol_ref, anchor_ref, contrast_ref, out_ref = refs
    else:
        mask_ref, anchor_ref, contrast_ref, out_ref = refs

    i = pl.program_id(0)

    anchor = anchor_ref[...]        # [tA, D] f32 (pipelined tile)
    contrast = contrast_ref[...]    # [N,  D] f32 (VMEM-resident strip)
    tA = anchor.shape[0]
    n_cols = contrast.shape[0]

    # Fold 1/temperature into the small anchor tile.
    anchor = anchor * jnp.float32(1.0 / temperature)

    # [tA, N] similarity on the MXU; contract last dim of both operands so
    # no transpose of the contrast strip is materialized.
    logits = lax.dot_general(
        anchor, contrast, (((1,), (1,)), ((), ())),
        preferred_element_type=jnp.float32)

    # Global row / column indices for this tile (VPU iota, no HBM traffic).
    row_g = i * tA + lax.broadcasted_iota(jnp.int32, (tA, n_cols), 0)
    col_g = lax.broadcasted_iota(jnp.int32, (tA, n_cols), 1)
    not_self = row_g != col_g                       # bool [tA, N]

    # Numerical stabilization: per-row max of the RAW logits (matches torch,
    # which takes the max before any masking).
    logits_max = jnp.max(logits, axis=1, keepdims=True)
    logits = logits - logits_max

    # exp(logits) masked on the self-contrast diagonal.
    exp_logits = jnp.where(not_self, jnp.exp(logits), 0.0)
    log_z = jnp.log(jnp.sum(exp_logits, axis=1, keepdims=True))       # [tA, 1]

    if use_labels:
        # Positive-pair mask from tiny label vectors: [tA,1] == [1,N].
        pos = jnp.logical_and(lrow_ref[...] == lcol_ref[...], not_self)
        mask_pos = jnp.sum(pos.astype(jnp.float32), axis=1, keepdims=True)
        sum_mask_logits = jnp.sum(jnp.where(pos, logits, 0.0),
                                  axis=1, keepdims=True)
    else:
        # Explicit user-supplied mask (may be asymmetric / weighted).
        mask = mask_ref[...] * not_self.astype(jnp.float32)           # [tA, N]
        mask_pos = jnp.sum(mask, axis=1, keepdims=True)
        sum_mask_logits = jnp.sum(mask * logits, axis=1, keepdims=True)

    mask_pos_safe = jnp.where(mask_pos < 1e-6, 1.0, mask_pos)

    # sum(mask * log_prob) == sum(mask * logits) - logZ * sum(mask).
    mean_log_prob_pos = (sum_mask_logits - log_z * mask_pos) / mask_pos_safe
    loss_rows = (-(temperature / base_temperature)) * mean_log_prob_pos

    # Zero padded anchor rows; the wrapper divides by the true anchor count.
    row_valid = (i * tA + lax.broadcasted_iota(jnp.int32, (tA, 1), 0)) < a_true
    out_ref[...] = jnp.where(row_valid, loss_rows, 0.0)


def supcon_loss(features, labels=None, mask=None, *,
                temperature=0.07, contrast_mode='all', base_temperature=0.07,
                block_rows=256):
    """JAX/Pallas port of SupConLoss.forward.

    features: [bsz, n_views, ...] (trailing dims flattened into feature dim).
    labels:   optional [bsz] int labels.
    mask:     optional [bsz, bsz] float mask (mutually exclusive with labels).
    """
    if features.ndim < 3:
        raise ValueError('`features` needs to be [bsz, n_views, ...]')
    if features.ndim > 3:
        features = features.reshape(features.shape[0], features.shape[1], -1)
    if labels is not None and mask is not None:
        raise ValueError('Cannot define both `labels` and `mask`')

    batch_size, n_views, dim = features.shape
    features = features.astype(jnp.float32)

    contrast_count = n_views
    # torch.cat(torch.unbind(features, dim=1), dim=0): [n_views*bsz, dim]
    contrast_feature = jnp.concatenate(
        [features[:, v] for v in range(n_views)], axis=0)

    if contrast_mode == 'one':
        anchor_feature = features[:, 0]
        anchor_count = 1
    elif contrast_mode == 'all':
        anchor_feature = contrast_feature
        anchor_count = contrast_count
    else:
        raise ValueError(f'Unknown mode: {contrast_mode}')

    A = anchor_count * batch_size
    N = contrast_count * batch_size
    D = dim

    tA = _choose_block_rows(A, N, D, max_rows=block_rows)
    A_pad = _round_up(A, tA)
    grid = (A_pad // tA,)

    anchor_pad = jnp.pad(anchor_feature, ((0, A_pad - A), (0, 0)))

    use_labels = mask is None
    if use_labels:
        if labels is None:
            group = jnp.arange(batch_size, dtype=jnp.int32)   # SimCLR eye mask
        else:
            labels = jnp.asarray(labels).reshape(-1)
            if labels.shape[0] != batch_size:
                raise ValueError('Num of labels does not match num of features')
            group = labels.astype(jnp.int32)
        label_col = jnp.tile(group, contrast_count).reshape(1, N)
        label_row = jnp.tile(group, anchor_count)
        label_row = jnp.pad(label_row, (0, A_pad - A),
                            constant_values=-1).reshape(A_pad, 1)
        operands = (label_row, label_col, anchor_pad, contrast_feature)
        in_specs = [
            pl.BlockSpec((tA, 1), lambda i: (i, 0)),
            pl.BlockSpec((1, N), lambda i: (0, 0)),
            pl.BlockSpec((tA, D), lambda i: (i, 0)),
            pl.BlockSpec((N, D), lambda i: (0, 0)),
        ]
    else:
        mask_rep = jnp.tile(jnp.asarray(mask, dtype=jnp.float32),
                            (anchor_count, contrast_count))          # [A, N]
        mask_rep = jnp.pad(mask_rep, ((0, A_pad - A), (0, 0)))
        operands = (mask_rep, anchor_pad, contrast_feature)
        in_specs = [
            pl.BlockSpec((tA, N), lambda i: (i, 0)),
            pl.BlockSpec((tA, D), lambda i: (i, 0)),
            pl.BlockSpec((N, D), lambda i: (0, 0)),
        ]

    kernel = functools.partial(
        _supcon_kernel,
        temperature=float(temperature),
        base_temperature=float(base_temperature),
        a_true=A,
        use_labels=use_labels,
    )

    # Raise the scoped-VMEM limit (v5e default is only 16 MiB); cap at 64 MiB
    # so the same config stays valid on v7x.
    est = 4 * (N * D + 2 * tA * D + 6 * tA * N) + (1 << 20)
    vmem_limit = int(min(max(2 * est, 32 * 1024 * 1024), 64 * 1024 * 1024))

    per_row = pl.pallas_call(
        kernel,
        out_shape=jax.ShapeDtypeStruct((A_pad, 1), jnp.float32),
        grid=grid,
        in_specs=in_specs,
        out_specs=pl.BlockSpec((tA, 1), lambda i: (i, 0)),
        compiler_params=pltpu.CompilerParams(
            dimension_semantics=("parallel",),
            vmem_limit_bytes=vmem_limit),
    )(*operands)

    # loss.view(anchor_count, batch_size).mean() == sum over true anchors / A.
    return jnp.sum(per_row) / jnp.float32(A)


def _supcon_loss_ref(features, labels=None, mask=None, *, temperature=0.07,
                     contrast_mode='all', base_temperature=0.07):
    """Pure-JAX reference (direct port of the torch code) for validation."""
    features = features.astype(jnp.float32)
    if features.ndim > 3:
        features = features.reshape(features.shape[0], features.shape[1], -1)
    bsz = features.shape[0]
    if labels is None and mask is None:
        mask = jnp.eye(bsz, dtype=jnp.float32)
    elif labels is not None:
        labels = jnp.asarray(labels).reshape(-1, 1)
        mask = (labels == labels.T).astype(jnp.float32)
    else:
        mask = jnp.asarray(mask, dtype=jnp.float32)
    contrast_count = features.shape[1]
    contrast_feature = jnp.concatenate(
        [features[:, v] for v in range(contrast_count)], axis=0)
    if contrast_mode == 'one':
        anchor_feature, anchor_count = features[:, 0], 1
    else:
        anchor_feature, anchor_count = contrast_feature, contrast_count
    A = anchor_count * bsz
    N = contrast_count * bsz
    adc = (anchor_feature @ contrast_feature.T) / temperature
    logits = adc - jnp.max(adc, axis=1, keepdims=True)
    mask = jnp.tile(mask, (anchor_count, contrast_count))
    logits_mask = jnp.ones((A, N), jnp.float32).at[
        jnp.arange(A), jnp.arange(A)].set(0.0)
    mask = mask * logits_mask
    exp_logits = jnp.exp(logits) * logits_mask
    log_prob = logits - jnp.log(exp_logits.sum(1, keepdims=True))
    mpp = mask.sum(1)
    mpp = jnp.where(mpp < 1e-6, 1.0, mpp)
    mean_lp = (mask * log_prob).sum(1) / mpp
    loss = -(temperature / base_temperature) * mean_lp
    return loss.reshape(anchor_count, bsz).mean()


if __name__ == "__main__":
    key = jax.random.PRNGKey(0)
    k_feat, k_lab = jax.random.split(key)

    bsz, n_views, dim = 8, 2, 32
    # L2-normalized features, as typically fed into SupConLoss.
    feats = jax.random.normal(k_feat, (bsz, n_views, dim), dtype=jnp.float32)
    feats = feats / jnp.linalg.norm(feats, axis=-1, keepdims=True)
    labels = jax.random.randint(k_lab, (bsz,), 0, 3)

    # Unsupervised (SimCLR-style) case.
    loss_unsup = jax.block_until_ready(supcon_loss(feats))
    # Supervised case with labels.
    loss_sup = jax.block_until_ready(supcon_loss(feats, labels=labels))
    # Explicit-mask path (equivalent to the labels mask).
    base_mask = (labels.reshape(-1, 1) == labels.reshape(1, -1)).astype(jnp.float32)
    loss_mask = jax.block_until_ready(supcon_loss(feats, mask=base_mask))
    # contrast_mode='one'.
    loss_one = jax.block_until_ready(
        supcon_loss(feats, labels=labels, contrast_mode='one'))
    # Padding path: A not a multiple of 8.
    bsz2 = 6
    feats2, labels2 = feats[:bsz2], labels[:bsz2]
    loss_pad = jax.block_until_ready(supcon_loss(feats2, labels=labels2))

    r_unsup = _supcon_loss_ref(feats)
    r_sup = _supcon_loss_ref(feats, labels=labels)
    r_one = _supcon_loss_ref(feats, labels=labels, contrast_mode='one')
    r_pad = _supcon_loss_ref(feats2, labels=labels2)

    assert jnp.allclose(loss_unsup, r_unsup, atol=2e-3), (loss_unsup, r_unsup)
    assert jnp.allclose(loss_sup, r_sup, atol=2e-3), (loss_sup, r_sup)
    assert jnp.allclose(loss_mask, r_sup, atol=2e-3), (loss_mask, r_sup)
    assert jnp.allclose(loss_one, r_one, atol=2e-3), (loss_one, r_one)
    assert jnp.allclose(loss_pad, r_pad, atol=2e-3), (loss_pad, r_pad)

    print("KERNEL_OK")
</pallas_src>

<mosaic_0001>
module attributes {stable_mosaic.version = 11 : i64} {
  func.func @_supcon_kernel(%arg0: i32, %arg1: memref<16x1xi32, #tpu.memory_space<vmem>>, %arg2: memref<1x16xi32, #tpu.memory_space<vmem>>, %arg3: memref<16x32xf32, #tpu.memory_space<vmem>>, %arg4: memref<16x32xf32, #tpu.memory_space<vmem>>, %arg5: memref<16x1xf32, #tpu.memory_space<vmem>>) attributes {dimension_semantics = [#tpu.dimension_semantics<parallel>], iteration_bounds = array<i64: 1>, scalar_prefetch = 0 : i64, scratch_operands = 0 : i64, tpu.core_type = #tpu.core_type<tc>, window_params = [{transform_indices = @transform_0, window_bounds = array<i64: 16, 1>}, {pipeline_mode = #tpu.pipeline_mode<synchronous>, transform_indices = @transform_1, window_bounds = array<i64: 1, 16>}, {transform_indices = @transform_2, window_bounds = array<i64: 16, 32>}, {pipeline_mode = #tpu.pipeline_mode<synchronous>, transform_indices = @transform_3, window_bounds = array<i64: 16, 32>}, {transform_indices = @transform_4, window_bounds = array<i64: 16, 1>}]} {
    %c0 = arith.constant 0 : index
    %c0_0 = arith.constant 0 : index
    %0 = vector.load %arg3[%c0, %c0_0] : memref<16x32xf32, #tpu.memory_space<vmem>>, vector<16x32xf32>
    %c0_1 = arith.constant 0 : index
    %c0_2 = arith.constant 0 : index
    %1 = vector.load %arg4[%c0_1, %c0_2] : memref<16x32xf32, #tpu.memory_space<vmem>>, vector<16x32xf32>
    %cst = arith.constant 14.2857141 : f32
    %2 = vector.broadcast %cst : f32 to vector<16x32xf32>
    %3 = arith.mulf %0, %2 : vector<16x32xf32>
    %cst_3 = arith.constant dense<0.000000e+00> : vector<16x16xf32>
    %4 = tpu.matmul %3, %1, %cst_3 {dimension_numbers = #tpu.dot_dimension_numbers<[1], [1], [0], [0], [0, 0, 1, 0], [], []>} : vector<16x32xf32>, vector<16x32xf32>, vector<16x16xf32> -> vector<16x16xf32>
    %c16_i32 = arith.constant 16 : i32
    %5 = arith.muli %arg0, %c16_i32 : i32
    %6 = tpu.iota {dimensions = array<i32: 0>} : vector<16x16xi32>
    %7 = vector.broadcast %5 : i32 to vector<16x16xi32>
    %8 = arith.addi %7, %6 : vector<16x16xi32>
    %9 = tpu.iota {dimensions = array<i32: 1>} : vector<16x16xi32>
    %10 = arith.cmpi ne, %8, %9 : vector<16x16xi32>
    %cst_4 = arith.constant dense<0xFF800000> : vector<16xf32>
    %11 = vector.multi_reduction <maximumf>, %4, %cst_4 [1] : vector<16x16xf32> to vector<16xf32>
    %12 = vector.shape_cast %11 : vector<16xf32> to vector<16x1xf32>
    %13 = vector.broadcast %12 : vector<16x1xf32> to vector<16x16xf32>
    %14 = arith.subf %4, %13 : vector<16x16xf32>
    %15 = math.exp %14 : vector<16x16xf32>
    %cst_5 = arith.constant 0.000000e+00 : f32
    %16 = vector.broadcast %cst_5 : f32 to vector<16x16xf32>
    %17 = arith.select %10, %15, %16 : vector<16x16xi1>, vector<16x16xf32>
    %cst_6 = arith.constant dense<0.000000e+00> : vector<16xf32>
    %18 = vector.multi_reduction <add>, %17, %cst_6 [1] : vector<16x16xf32> to vector<16xf32>
    %19 = vector.shape_cast %18 : vector<16xf32> to vector<16x1xf32>
    %20 = math.log %19 : vector<16x1xf32>
    %c0_7 = arith.constant 0 : index
    %c0_8 = arith.constant 0 : index
    %21 = vector.load %arg1[%c0_7, %c0_8] : memref<16x1xi32, #tpu.memory_space<vmem>>, vector<16x1xi32>
    %c0_9 = arith.constant 0 : index
    %c0_10 = arith.constant 0 : index
    %22 = vector.load %arg2[%c0_9, %c0_10] : memref<1x16xi32, #tpu.memory_space<vmem>>, vector<1x16xi32>
    %23 = vector.broadcast %21 : vector<16x1xi32> to vector<16x16xi32>
    %24 = vector.broadcast %22 : vector<1x16xi32> to vector<16x16xi32>
    %25 = arith.cmpi eq, %23, %24 : vector<16x16xi32>
    %26 = arith.andi %25, %10 : vector<16x16xi1>
    %27 = arith.extui %26 : vector<16x16xi1> to vector<16x16xi32>
    %28 = arith.sitofp %27 : vector<16x16xi32> to vector<16x16xf32>
    %cst_11 = arith.constant dense<0.000000e+00> : vector<16xf32>
    %29 = vector.multi_reduction <add>, %28, %cst_11 [1] : vector<16x16xf32> to vector<16xf32>
    %30 = vector.shape_cast %29 : vector<16xf32> to vector<16x1xf32>
    %cst_12 = arith.constant 0.000000e+00 : f32
    %31 = vector.broadcast %cst_12 : f32 to vector<16x16xf32>
    %32 = arith.select %26, %14, %31 : vector<16x16xi1>, vector<16x16xf32>
    %cst_13 = arith.constant dense<0.000000e+00> : vector<16xf32>
    %33 = vector.multi_reduction <add>, %32, %cst_13 [1] : vector<16x16xf32> to vector<16xf32>
    %34 = vector.shape_cast %33 : vector<16xf32> to vector<16x1xf32>
    %cst_14 = arith.constant 9.99999997E-7 : f32
    %35 = vector.broadcast %cst_14 : f32 to vector<16x1xf32>
    %36 = arith.cmpf olt, %30, %35 : vector<16x1xf32>
    %cst_15 = arith.constant 1.000000e+00 : f32
    %37 = vector.broadcast %cst_15 : f32 to vector<16x1xf32>
    %38 = arith.select %36, %37, %30 : vector<16x1xi1>, vector<16x1xf32>
    %39 = arith.mulf %20, %30 : vector<16x1xf32>
    %40 = arith.subf %34, %39 : vector<16x1xf32>
    %41 = arith.divf %40, %38 : vector<16x1xf32>
    %cst_16 = arith.constant -1.000000e+00 : f32
    %42 = vector.broadcast %cst_16 : f32 to vector<16x1xf32>
    %43 = arith.mulf %42, %41 : vector<16x1xf32>
    %c16_i32_17 = arith.constant 16 : i32
    %44 = arith.muli %arg0, %c16_i32_17 : i32
    %45 = tpu.iota {dimensions = array<i32: 0>} : vector<16x1xi32>
    %46 = vector.broadcast %44 : i32 to vector<16x1xi32>
    %47 = arith.addi %46, %45 : vector<16x1xi32>
    %c16_i32_18 = arith.constant 16 : i32
    %48 = vector.broadcast %c16_i32_18 : i32 to vector<16x1xi32>
    %49 = arith.cmpi slt, %47, %48 : vector<16x1xi32>
    %cst_19 = arith.constant 0.000000e+00 : f32
    %50 = vector.broadcast %cst_19 : f32 to vector<16x1xf32>
    %51 = arith.select %49, %43, %50 : vector<16x1xi1>, vector<16x1xf32>
    %c0_20 = arith.constant 0 : index
    %c0_21 = arith.constant 0 : index
    %52 = vector.load %arg5[%c0_20, %c0_21] : memref<16x1xf32, #tpu.memory_space<vmem>>, vector<16x1xf32>
    tpu.vector_store %arg5[%c0_20, %c0_21], %51 {strides = array<i32>} : memref<16x1xf32, #tpu.memory_space<vmem>>, vector<16x1xf32>,
    return
  }
  func.func @transform_0(%arg0: i32) -> (i32, i32) {
    %c0_i32 = arith.constant 0 : i32
    %c0_i32_0 = arith.constant 0 : i32
    return %arg0, %c0_i32 : i32, i32
  }
  func.func @transform_1(%arg0: i32) -> (i32, i32) {
    %c0_i32 = arith.constant 0 : i32
    %c0_i32_0 = arith.constant 0 : i32
    %c0_i32_1 = arith.constant 0 : i32
    return %c0_i32, %c0_i32_0 : i32, i32
  }
  func.func @transform_2(%arg0: i32) -> (i32, i32) {
    %c0_i32 = arith.constant 0 : i32
    %c0_i32_0 = arith.constant 0 : i32
    return %arg0, %c0_i32 : i32, i32
  }
  func.func @transform_3(%arg0: i32) -> (i32, i32) {
    %c0_i32 = arith.constant 0 : i32
    %c0_i32_0 = arith.constant 0 : i32
    %c0_i32_1 = arith.constant 0 : i32
    return %c0_i32, %c0_i32_0 : i32, i32
  }
  func.func @transform_4(%arg0: i32) -> (i32, i32) {
    %c0_i32 = arith.constant 0 : i32
    %c0_i32_0 = arith.constant 0 : i32
    return %arg0, %c0_i32 : i32, i32
  }
}

</mosaic_0001>

<llo_original>
// kernel: tpu_custom_call.1
$region0: #{tpu_custom_call.1}
  #allocation0 [shape = 'u32[]', space=smem, size = 0x4, offset = 0x4, fixed_abs, tag = 'smem constant byte address 0x4 - core index']
  #allocation1 [shape = 'u32[144,128]{1,0:T(1,128)}', space=vmem, size = 0x12000, scoped, tag = 'internal scratch']
  %s0 = inlined_call_operand.vmem [shape: s32[16,1], index: 0, kind: input, shape index: {}]
  %s1 = inlined_call_operand.vmem [shape: s32[1,16], index: 1, kind: input, shape index: {}]
  %s2 = inlined_call_operand.vmem [shape: f32[16,32], index: 2, kind: input, shape index: {}]
  %s3 = inlined_call_operand.hbm [shape: f32[16,32], index: 3, kind: input, shape index: {}]
  %s4 = inlined_call_operand.vmem [shape: f32[16,1], index: 4, kind: output, shape index: {}]
  %s5 = sld [smem:[#allocation0]]
  $region30: #{tpu_custom_call.1} parent=0
    _
  %s7 = ssub.s32 1, %s5
  %s8 = scalar_select 0, %s7, %s5
  $region1: #{tpu_custom_call.1} parent=0
    #allocation2 [shape = 'u8[8192]{0}', space=vmem, size = 0x2000, scoped, tag = 'input window, operand 3, single buffered']
    #allocation3 [shape = 's32[1]{0}', space=sflag, size = 0x4, scoped, tag = 'scoped memory for tpu_custom_call.1']
    %9 = vsyncpa [#allocation3], 0
    // Predicated region
    $region2: #{tpu_custom_call.1} parent=1 // pred_check
      _
    $region3: #{tpu_custom_call.1} parent=1 // pred_check_branch
      %11 = sbr.rel (0) target = $region5
    $region4: #{tpu_custom_call.1} parent=1 // pred_region
      _
    $region5: #{tpu_custom_call.1} parent=1 // pred_fallthru
      _
    // Predicated region
    $region6: #{tpu_custom_call.1} parent=1 // pred_check
      _
    $region7: #{tpu_custom_call.1} parent=1 // pred_check_branch
      %13 = sbr.rel (0) target = $region9
    $region8: #{tpu_custom_call.1} parent=1 // pred_region
      _
    $region9: #{tpu_custom_call.1} parent=1 // pred_fallthru
      _
    // Predicated region
    $region10: #{tpu_custom_call.1} parent=1 // pred_check
      _
    $region11: #{tpu_custom_call.1} parent=1 // pred_check_branch
      %15 = sbr.rel (0) target = $region13
    $region12: #{tpu_custom_call.1} parent=1 // pred_region
      _
    $region13: #{tpu_custom_call.1} parent=1 // pred_fallthru
      _
    // Predicated region
    $region14: #{tpu_custom_call.1} parent=1 // pred_check
      _
    $region15: #{tpu_custom_call.1} parent=1 // pred_check_branch
      %17 = sbr.rel (0) target = $region17
    $region16: #{tpu_custom_call.1} parent=1 // pred_region
      %s19 = ssub.s32 256, 256
      %20 = vsyncadd [#allocation3], %s19
      %s21 = sshll.u32 [#allocation2], 4
      %s22 = int_to_ptr.vmem [resolvable:$true] %s21
      %27 = dma.hbm_to_vmem [thread:$0]  %s3, 256, %s22, [#allocation3], 128, 128, 8
    $region17: #{tpu_custom_call.1} parent=1 // pred_fallthru
      _
    // Predicated region
    $region18: #{tpu_custom_call.1} parent=1 // pred_check
      _
    $region19: #{tpu_custom_call.1} parent=1 // pred_check_branch
      %29 = sbr.rel (0) target = $region21
    $region20: #{tpu_custom_call.1} parent=1 // pred_region
      %30 = dma.done [#allocation3], 256
    $region21: #{tpu_custom_call.1} parent=1 // pred_fallthru
      _
    %v31 = vld [vmem:[%s2] sm:$0xff]
    %v32 = vld [vmem:[%s2 + $0x8] sm:$0xff]
    %v33 = vld [vmem:[#allocation2] sm:$0xff]
    %v34 = vld [vmem:[#allocation2 + $0x8] sm:$0xff]
    %v35 = vmul.f32 %v31, 14.285714
    %v36 = vmul.f32 %v32, 14.285714
    %vm37 = vcmask 261120
    %v39 = vsel %vm37, %v35, 0
    %v42 = vsel %vm37, %v36, 0
    %v45 = vsel %vm37, %v33, 0
    %v48 = vsel %vm37, %v34, 0
    %50 = vmatprep.subr.mxu0 0.0
    %51 = vmatpush1.xpose.msra.mxu0 0.0
    %52 = vmatprep.subr.mxu0 0.0
    %53 = vmatpush1.xpose.msra.mxu0 0.0
    %54 = vmatprep.subr.mxu0 0.0
    %55 = vmatpush1.xpose.msra.mxu0 0.0
    %56 = vmatprep.subr.mxu0 0.0
    %57 = vmatpush1.xpose.msra.mxu0 0.0
    %58 = vmatprep.subr.mxu0 0.0
    %59 = vmatpush1.xpose.msra.mxu0 0.0
    %60 = vmatprep.subr.mxu0 0.0
    %61 = vmatpush1.xpose.msra.mxu0 0.0
    %62 = vmatprep.subr.mxu0 0.0
    %63 = vmatpush1.xpose.msra.mxu0 0.0
    %64 = vmatprep.subr.mxu0 0.0
    %65 = vmatpush1.xpose.msra.mxu0 0.0
    %66 = vmatprep.subr.mxu0 0.0
    %67 = vmatpush1.xpose.msra.mxu0 0.0
    %68 = vmatprep.subr.mxu0 0.0
    %69 = vmatpush1.xpose.msra.mxu0 0.0
    %70 = vmatprep.subr.mxu0 0.0
    %71 = vmatpush1.xpose.msra.mxu0 0.0
    %72 = vmatprep.subr.mxu0 0.0
    %73 = vmatpush1.xpose.msra.mxu0 0.0
    %74 = vmatprep.subr.mxu0 0.0
    %75 = vmatpush1.xpose.msra.mxu0 0.0
    %76 = vmatprep.subr.mxu0 0.0
    %77 = vmatpush1.xpose.msra.mxu0 0.0
    %78 = vmatprep.subr.mxu0 0.0
    %79 = vmatpush1.xpose.msra.mxu0 %v48
    %80 = vmatprep.subr.mxu0 0.0
    %81 = vmatpush1.xpose.msra.mxu0 %v45
    %82 = vmatprep.subr.mxu0 0.0
    %83 = vmatpush2.xpose.msra.mxu0 0.0
    %84 = vmatprep.subr.mxu0 0.0
    %85 = vmatpush2.xpose.msra.mxu0 0.0
    %86 = vmatprep.subr.mxu0 0.0
    %87 = vmatpush2.xpose.msra.mxu0 0.0
    %88 = vmatprep.subr.mxu0 0.0
    %89 = vmatpush2.xpose.msra.mxu0 0.0
    %90 = vmatprep.subr.mxu0 0.0
    %91 = vmatpush2.xpose.msra.mxu0 0.0
    %92 = vmatprep.subr.mxu0 0.0
    %93 = vmatpush2.xpose.msra.mxu0 0.0
    %94 = vmatprep.subr.mxu0 0.0
    %95 = vmatpush2.xpose.msra.mxu0 0.0
    %96 = vmatprep.subr.mxu0 0.0
    %97 = vmatpush2.xpose.msra.mxu0 0.0
    %98 = vmatprep.subr.mxu0 0.0
    %99 = vmatpush2.xpose.msra.mxu0 0.0
    %100 = vmatprep.subr.mxu0 0.0
    %101 = vmatpush2.xpose.msra.mxu0 0.0
    %102 = vmatprep.subr.mxu0 0.0
    %103 = vmatpush2.xpose.msra.mxu0 0.0
    %104 = vmatprep.subr.mxu0 0.0
    %105 = vmatpush2.xpose.msra.mxu0 0.0
    %106 = vmatprep.subr.mxu0 0.0
    %107 = vmatpush2.xpose.msra.mxu0 0.0
    %108 = vmatprep.subr.mxu0 0.0
    %109 = vmatpush2.xpose.msra.mxu0 0.0
    %110 = vmatprep.subr.mxu0 0.0
    %111 = vmatpush2.xpose.msra.mxu0 0.0
    %112 = vmatprep.subr.mxu0 0.0
    %113 = vmatpush2.xpose.msra.mxu0 0.0
    %114 = vmatprep.mubr.f32.mxu0 0.0
    %115 = vmatmul.mubr.f32.gmra.mxu0 %v39
    %v116 = vpop.f32.mrf.mxu0
    %v117 = vadd.f32 0.0, %v116
    %v118 = vpop.f32.mrf.mxu0
    %119 = vmatprep.mubr.f32.mxu0 0.0
    %120 = vmatmul.mubr.f32.gmra.mxu0 %v42
    %v121 = vpop.f32.mrf.mxu0
    %v122 = vadd.f32 0.0, %v121
    %v123 = vpop.f32.mrf.mxu0
    %124 = vdwg.mxu0
    %s125 = smul.u32 0, 16
    %v126 = vlaneseq
    %v127 = vshrl.u32 %v126, 7
    %v128 = vadd.s32 %v127, 8
    %v129 = vstv %s125
    %v130 = vadd.s32 %v129, %v127
    %v131 = vadd.s32 %v129, %v128
    %v132 = vlaneseq
    %v133 = vand.u32 %v132, 127
    %vm134 = vcmp.ne.s32.totalorder %v130, %v133
    %vm135 = vcmp.ne.s32.totalorder %v131, %v133
    %vm136 = vcmask 130048
    %v137 = vsel %vm136, %v117, -inf
    %138 = vmax.xlane.f32.xlu0 %v137
    %v139 = vpop.xlane.xlu0 %138
    %v140 = vsel %vm136, %v122, -inf
    %141 = vmax.xlane.f32.xlu0 %v140
    %v142 = vpop.xlane.xlu0 %141
    %v143 = vsub.f32 %v117, %v139
    %v144 = vsub.f32 %v122, %v142
    %v145 = vmul.f32 %v143, 1.442695
    %v146 = vpow.pop %v145
    %v147 = vmul.f32 %v144, 1.442695
    %v148 = vpow.pop %v147
    %v149 = vsel %vm134, %v146, 0.0
    %v150 = vsel %vm135, %v148, 0.0
    %v151 = vsel %vm136, %v149, 0.0
    %152 = vadd.xlane.f32.xlu0 %v151
    %v153 = vpop.xlane.xlu0 %152
    %v154 = vsel %vm136, %v150, 0.0
    %155 = vadd.xlane.f32.xlu0 %v154
    %v156 = vpop.xlane.xlu0 %155
    %v157 = vlog2.pop %v153
    %v158 = vmul.f32 %v157, 0.6931472
    %v159 = vlog2.pop %v156
    %v160 = vmul.f32 %v159, 0.6931472
    %v161 = vld [vmem:[%s0] sm:$0xff]
    %v162 = vld [vmem:[%s0 + $0x8] sm:$0xff]
    %v163 = vld [vmem:[%s1] sm:$0x1]
    %164 = vset.pattern.permute.xlu0 0
    %165 = vperm.xlu0 %164, %v161
    %v166 = vpop.permute.xlu0 %165
    %167 = vset.pattern.permute.xlu0 0
    %168 = vperm.xlu0 %167, %v162
    %v169 = vpop.permute.xlu0 %168
    %v170 = vlaneseq
    %v171 = vshrl.u32 %v170, 7
    %v172 = vsub.s32 0, %v171
    %v173 = vrot.slane %v163, %v172
    %vm174 = vcmp.eq.s32.totalorder %v166, %v173
    %vm175 = vcmp.eq.s32.totalorder %v169, %v173
    %vm176 = vmand %vm174, %vm134
    %vm177 = vmand %vm175, %vm135
    %v178 = vsel %vm176, 1, 0
    %v179 = vsel %vm177, 1, 0
    %v180 = vcvt.s32.f32 %v178
    %v181 = vcvt.s32.f32 %v179
    %v182 = vsel %vm136, %v180, 0.0
    %183 = vadd.xlane.f32.xlu0 %v182
    %v184 = vpop.xlane.xlu0 %183
    %v185 = vsel %vm136, %v181, 0.0
    %186 = vadd.xlane.f32.xlu0 %v185
    %v187 = vpop.xlane.xlu0 %186
    %v188 = vsel %vm176, %v143, 0.0
    %v189 = vsel %vm177, %v144, 0.0
    %v190 = vsel %vm136, %v188, 0.0
    %191 = vadd.xlane.f32.xlu0 %v190
    %v192 = vpop.xlane.xlu0 %191
    %v193 = vsel %vm136, %v189, 0.0
    %194 = vadd.xlane.f32.xlu0 %v193
    %v195 = vpop.xlane.xlu0 %194
    %vm196 = vcmp.lt.f32.partialorder %v184, 1e-06
    %vm197 = vcmp.lt.f32.partialorder %v187, 1e-06
    %v198 = vsel %vm196, 1.0, %v184
    %v199 = vsel %vm197, 1.0, %v187
    %v200 = vmul.f32 %v158, %v184
    %v201 = vmul.f32 %v160, %v187
    %v202 = vsub.f32 %v192, %v200
    %v203 = vsub.f32 %v195, %v201
    %v204 = vrcp.pop %v198
    %v205 = vmul.f32 %v202, %v204
    %v206 = vrcp.pop %v199
    %v207 = vmul.f32 %v203, %v206
    %v208 = vmul.f32 %v205, -1.0
    %v209 = vmul.f32 %v207, -1.0
    %vm210 = vcmp.lt.s32.totalorder %v130, 16
    %vm211 = vcmp.lt.s32.totalorder %v131, 16
    %v212 = vsel %vm210, %v208, 0.0
    %v213 = vsel %vm211, %v209, 0.0
    %vm214 = vcmask 7168
    %215 = vst.msk [vmem:[%s4] sm:$0xff] %vm214, %v212
    %216 = vst.msk [vmem:[%s4 + $0x8] sm:$0xff] %vm214, %v213
    // Predicated region
    $region22: #{tpu_custom_call.1} parent=1 // pred_check
      _
    $region23: #{tpu_custom_call.1} parent=1 // pred_check_branch
      %218 = sbr.rel (0) target = $region25
    $region24: #{tpu_custom_call.1} parent=1 // pred_region
      _
    $region25: #{tpu_custom_call.1} parent=1 // pred_fallthru
      _
    // Predicated region
    $region26: #{tpu_custom_call.1} parent=1 // pred_check
      _
    $region27: #{tpu_custom_call.1} parent=1 // pred_check_branch
      %220 = sbr.rel (0) target = $region29
    $region28: #{tpu_custom_call.1} parent=1 // pred_region
      _
    $region29: #{tpu_custom_call.1} parent=1 // pred_fallthru
      _
    %221 = vsyncpa [#allocation3], 1

</llo_original>
